<compile_context>
chip_gen: v7x
topology: tpu7x:2x2x1
jax: 0.10.0
libtpu: 0.0.40
codegen_flags: <defaults>
</compile_context>

<pallas_src>
import functools

import jax
import jax.numpy as jnp
from jax.experimental import pallas as pl
from jax.experimental.pallas import tpu as pltpu


def _dln_kernel(*refs, dropout_p, eps, has_residual, has_mask, prenorm):
    """refs = (x0, [x1], [mask], gamma, beta, z, [xres]) depending on flags."""
    it = iter(refs)
    x0_ref = next(it)
    x1_ref = next(it) if has_residual else None
    mask_ref = next(it) if has_mask else None
    gamma_ref = next(it)
    beta_ref = next(it)
    z_ref = next(it)
    xres_ref = next(it) if prenorm else None

    # Compute in fp32 (residual accumulation in fp32).
    x = x0_ref[...].astype(jnp.float32)

    if has_mask:
        # keep with probability (1 - p): u < 1 - p   (torch convention)
        keep = mask_ref[...] < jnp.float32(1.0 - dropout_p)
        scale = jnp.float32(1.0 / (1.0 - dropout_p))
        x = jnp.where(keep, x * scale, jnp.float32(0.0))

    if has_residual:
        x = x + x1_ref[...].astype(jnp.float32)

    gamma = gamma_ref[...].astype(jnp.float32)   # (1, H)
    beta = beta_ref[...].astype(jnp.float32)     # (1, H)

    mu = jnp.mean(x, axis=-1, keepdims=True)
    xc = x - mu
    var = jnp.mean(xc * xc, axis=-1, keepdims=True)     # biased variance (LayerNorm)
    rsigma = jax.lax.rsqrt(var + jnp.float32(eps))

    z = xc * rsigma * gamma + beta

    z_ref[...] = z.astype(z_ref.dtype)
    if prenorm:
        xres_ref[...] = x.astype(xres_ref.dtype)


def _pick_block_rows(rows, hidden, n_streams,
                     vmem_budget_bytes=16 * 1024 * 1024, elem_bytes=4):
    """Largest multiple-of-8 row tile whose double-buffered streams fit the budget."""
    per_row_bytes = 2 * n_streams * hidden * elem_bytes     # 2 = double buffering
    max_rows = max(8, (vmem_budget_bytes // per_row_bytes) // 8 * 8)
    rows8 = ((rows + 7) // 8) * 8
    return int(min(rows8, max_rows, 1024))


def dropout_add_layer_norm(x0, x1, weight, bias, dropout_p, epsilon,
                           prenorm=False, residual_in_fp32=False,
                           dropout_rng=None):
    """JAX/Pallas forward of DropoutAddLayerNorm.

    x0: (..., H) main input, x1: (..., H) residual or None.
    Returns z (same shape as x0), plus the pre-norm sum if prenorm=True.
    """
    dropout_p = float(dropout_p)
    assert 0.0 <= dropout_p < 1.0, "dropout_p must be in [0, 1)"

    orig_shape = x0.shape
    H = int(weight.shape[0])
    x0m = x0.reshape(-1, H)
    rows = x0m.shape[0]

    has_residual = x1 is not None
    has_mask = dropout_p > 0.0
    if has_mask and dropout_rng is None:
        dropout_rng = jax.random.PRNGKey(0)

    # stream count = inputs (x0 [+x1] [+mask]) + outputs (z [+xres])
    n_streams = 2 + int(has_residual) + int(has_mask) + int(prenorm)
    block_rows = _pick_block_rows(rows, H, n_streams)
    rows_p = ((rows + block_rows - 1) // block_rows) * block_rows
    grid = (rows_p // block_rows,)

    def pad_rows(a):
        if a.shape[0] == rows_p:
            return a
        return jnp.pad(a, ((0, rows_p - a.shape[0]), (0, 0)))

    inputs = [pad_rows(x0m)]
    if has_residual:
        inputs.append(pad_rows(x1.reshape(-1, H)))
    if has_mask:
        # Host-side uniform draw (portable; in-kernel HW PRNG is not available in
        # interpret/CPU fallback).  Generated directly at the padded shape.
        inputs.append(jax.random.uniform(dropout_rng, (rows_p, H), dtype=jnp.float32))
    inputs.append(weight.reshape(1, H))
    inputs.append(bias.reshape(1, H))

    row_spec = pl.BlockSpec((block_rows, H), lambda i: (i, 0))
    vec_spec = pl.BlockSpec((1, H), lambda i: (0, 0))

    in_specs = [row_spec]
    if has_residual:
        in_specs.append(row_spec)
    if has_mask:
        in_specs.append(row_spec)
    in_specs += [vec_spec, vec_spec]

    if has_residual:
        xres_dtype = x1.dtype
    else:
        xres_dtype = jnp.float32 if residual_in_fp32 else x0.dtype

    out_shapes = [jax.ShapeDtypeStruct((rows_p, H), x0.dtype)]
    out_specs = [row_spec]
    if prenorm:
        out_shapes.append(jax.ShapeDtypeStruct((rows_p, H), xres_dtype))
        out_specs.append(row_spec)

    kernel = functools.partial(
        _dln_kernel,
        dropout_p=dropout_p,
        eps=float(epsilon),
        has_residual=has_residual,
        has_mask=has_mask,
        prenorm=prenorm,
    )

    outs = pl.pallas_call(
        kernel,
        out_shape=tuple(out_shapes),
        grid_spec=pltpu.PrefetchScalarGridSpec(
            num_scalar_prefetch=0,
            grid=grid,
            in_specs=in_specs,
            out_specs=out_specs,
        ),
        compiler_params=pltpu.CompilerParams(
            # Blocks are fully independent (mask is an input stream, not stateful PRNG),
            # so the grid axis can be sharded across TensorCores on v7x.
            dimension_semantics=("parallel",),
            # Headroom above the ~16 MiB double-buffered stream budget; safe on all gens.
            vmem_limit_bytes=32 * 1024 * 1024,
        ),
    )(*inputs)

    z = outs[0]
    if rows_p != rows:
        z = z[:rows]
    z = z.reshape(orig_shape)

    if prenorm:
        xres = outs[1]
        if rows_p != rows:
            xres = xres[:rows]
        return z, xres.reshape(orig_shape)
    return z


class DropoutAddLayerNormJax:
    """Mirror of the PyTorch DropoutAddLayerNorm module (forward only)."""

    def __init__(self, hidden_size, prenorm=False, p=0.5, eps=1e-5,
                 residual_in_fp32=False, dtype=jnp.float32):
        self.prenorm = prenorm
        self.p = p
        self.epsilon = eps
        self.residual_in_fp32 = residual_in_fp32
        # reset_parameters(): ones / zeros, deterministic.
        self.weight = jnp.ones((hidden_size,), dtype=dtype)
        self.bias = jnp.zeros((hidden_size,), dtype=dtype)
        self.training = True

    def __call__(self, x0, x1=None, dropout_rng=None):
        p = self.p if self.training else 0.0
        return dropout_add_layer_norm(
            x0, x1, self.weight, self.bias, p, self.epsilon,
            prenorm=self.prenorm, residual_in_fp32=self.residual_in_fp32,
            dropout_rng=dropout_rng)


def _reference_ln(x0, x1, weight, bias, eps):
    x = x0.astype(jnp.float32) + (x1.astype(jnp.float32) if x1 is not None else 0.0)
    mu = jnp.mean(x, axis=-1, keepdims=True)
    xc = x - mu
    var = jnp.mean(xc * xc, axis=-1, keepdims=True)
    return (xc * jax.lax.rsqrt(var + eps) * weight + bias).astype(x0.dtype)


if __name__ == "__main__":
    key = jax.random.PRNGKey(0)
    k0, k1, k2, kdrop = jax.random.split(key, 4)

    batch, seq, hidden = 2, 8, 128
    x0 = jax.random.normal(k0, (batch, seq, hidden), dtype=jnp.float32)
    x1 = jax.random.normal(k1, (batch, seq, hidden), dtype=jnp.float32)

    mod = DropoutAddLayerNormJax(hidden_size=hidden, prenorm=True, p=0.5, eps=1e-5)

    # --- eval mode (dropout_p = 0, prenorm): compare against pure-JAX reference ---
    mod.training = False
    z_eval, xres_eval = mod(x0, x1)
    jax.block_until_ready(z_eval)
    z_ref = _reference_ln(x0, x1, mod.weight, mod.bias, mod.epsilon)
    assert jnp.allclose(z_eval, z_ref, atol=1e-5, rtol=1e-5), "eval-mode mismatch"
    assert jnp.allclose(xres_eval, x0 + x1, atol=1e-6), "prenorm residual mismatch"

    # --- no-residual, prenorm=False, ragged row count (exercises padding path) ---
    mod2 = DropoutAddLayerNormJax(hidden_size=hidden, prenorm=False, p=0.5, eps=1e-5)
    mod2.training = False
    x_ragged = jax.random.normal(k2, (10, hidden), dtype=jnp.float32)
    z_nr = mod2(x_ragged, None)
    jax.block_until_ready(z_nr)
    z_nr_ref = _reference_ln(x_ragged, None, mod2.weight, mod2.bias, mod2.epsilon)
    assert z_nr.shape == x_ragged.shape
    assert jnp.allclose(z_nr, z_nr_ref, atol=1e-5, rtol=1e-5), "no-residual mismatch"

    # --- training mode (dropout_p = 0.5): fused dropout + add + LN ---
    mod.training = True
    z_train, xres_train = mod(x0, x1, dropout_rng=kdrop)
    jax.block_until_ready(z_train)
    assert bool(jnp.all(jnp.isfinite(z_train)))
    # per-row LayerNorm output should be ~zero-mean (gamma=1, beta=0)
    assert bool(jnp.all(jnp.abs(jnp.mean(z_train, axis=-1)) < 1e-4))
    # residual output must equal scaled-dropout(x0) + x1 -> values either x1 or x0/(1-p)+x1
    diff = (xres_train - x1)  # equals 0 or 2*x0 elementwise (p=0.5 -> scale 2)
    ok = jnp.isclose(diff, 0.0, atol=1e-5) | jnp.isclose(diff, 2.0 * x0, atol=1e-5)
    assert bool(jnp.all(ok)), "dropout/residual semantics mismatch"

    print("KERNEL_OK")
</pallas_src>

<mosaic_0001>
module attributes {stable_mosaic.version = 11 : i64} {
  func.func @_dln_kernel(%arg0: i32, %arg1: memref<16x128xf32, #tpu.memory_space<vmem>>, %arg2: memref<16x128xf32, #tpu.memory_space<vmem>>, %arg3: memref<1x128xf32, #tpu.memory_space<vmem>>, %arg4: memref<1x128xf32, #tpu.memory_space<vmem>>, %arg5: memref<16x128xf32, #tpu.memory_space<vmem>>, %arg6: memref<16x128xf32, #tpu.memory_space<vmem>>) attributes {dimension_semantics = [#tpu.dimension_semantics<parallel>], iteration_bounds = array<i64: 1>, scalar_prefetch = 0 : i64, scratch_operands = 0 : i64, tpu.core_type = #tpu.core_type<tc>, window_params = [{transform_indices = @transform_0, window_bounds = array<i64: 16, 128>}, {transform_indices = @transform_1, window_bounds = array<i64: 16, 128>}, {pipeline_mode = #tpu.pipeline_mode<synchronous>, transform_indices = @transform_2, window_bounds = array<i64: 1, 128>}, {pipeline_mode = #tpu.pipeline_mode<synchronous>, transform_indices = @transform_3, window_bounds = array<i64: 1, 128>}, {transform_indices = @transform_4, window_bounds = array<i64: 16, 128>}, {transform_indices = @transform_5, window_bounds = array<i64: 16, 128>}]} {
    %c0 = arith.constant 0 : index
    %c0_0 = arith.constant 0 : index
    %0 = vector.load %arg1[%c0, %c0_0] : memref<16x128xf32, #tpu.memory_space<vmem>>, vector<16x128xf32>
    %c0_1 = arith.constant 0 : index
    %c0_2 = arith.constant 0 : index
    %1 = vector.load %arg2[%c0_1, %c0_2] : memref<16x128xf32, #tpu.memory_space<vmem>>, vector<16x128xf32>
    %2 = arith.addf %0, %1 : vector<16x128xf32>
    %c0_3 = arith.constant 0 : index
    %c0_4 = arith.constant 0 : index
    %3 = vector.load %arg3[%c0_3, %c0_4] : memref<1x128xf32, #tpu.memory_space<vmem>>, vector<1x128xf32>
    %c0_5 = arith.constant 0 : index
    %c0_6 = arith.constant 0 : index
    %4 = vector.load %arg4[%c0_5, %c0_6] : memref<1x128xf32, #tpu.memory_space<vmem>>, vector<1x128xf32>
    %cst = arith.constant dense<0.000000e+00> : vector<16xf32>
    %5 = vector.multi_reduction <add>, %2, %cst [1] : vector<16x128xf32> to vector<16xf32>
    %6 = vector.shape_cast %5 : vector<16xf32> to vector<16x1xf32>
    %cst_7 = arith.constant 1.280000e+02 : f32
    %7 = vector.broadcast %cst_7 : f32 to vector<16x1xf32>
    %8 = arith.divf %6, %7 : vector<16x1xf32>
    %9 = vector.broadcast %8 : vector<16x1xf32> to vector<16x128xf32>
    %10 = arith.subf %2, %9 : vector<16x128xf32>
    %11 = arith.mulf %10, %10 : vector<16x128xf32>
    %cst_8 = arith.constant dense<0.000000e+00> : vector<16xf32>
    %12 = vector.multi_reduction <add>, %11, %cst_8 [1] : vector<16x128xf32> to vector<16xf32>
    %13 = vector.shape_cast %12 : vector<16xf32> to vector<16x1xf32>
    %cst_9 = arith.constant 1.280000e+02 : f32
    %14 = vector.broadcast %cst_9 : f32 to vector<16x1xf32>
    %15 = arith.divf %13, %14 : vector<16x1xf32>
    %cst_10 = arith.constant 9.99999974E-6 : f32
    %16 = vector.broadcast %cst_10 : f32 to vector<16x1xf32>
    %17 = arith.addf %15, %16 : vector<16x1xf32>
    %18 = math.rsqrt %17 : vector<16x1xf32>
    %19 = vector.broadcast %18 : vector<16x1xf32> to vector<16x128xf32>
    %20 = arith.mulf %10, %19 : vector<16x128xf32>
    %21 = vector.broadcast %3 : vector<1x128xf32> to vector<16x128xf32>
    %22 = arith.mulf %20, %21 : vector<16x128xf32>
    %23 = vector.broadcast %4 : vector<1x128xf32> to vector<16x128xf32>
    %24 = arith.addf %22, %23 : vector<16x128xf32>
    %c0_11 = arith.constant 0 : index
    %c0_12 = arith.constant 0 : index
    %25 = vector.load %arg5[%c0_11, %c0_12] : memref<16x128xf32, #tpu.memory_space<vmem>>, vector<16x128xf32>
    tpu.vector_store %arg5[%c0_11, %c0_12], %24 {strides = array<i32>} : memref<16x128xf32, #tpu.memory_space<vmem>>, vector<16x128xf32>,
    %c0_13 = arith.constant 0 : index
    %c0_14 = arith.constant 0 : index
    %26 = vector.load %arg6[%c0_13, %c0_14] : memref<16x128xf32, #tpu.memory_space<vmem>>, vector<16x128xf32>
    tpu.vector_store %arg6[%c0_13, %c0_14], %2 {strides = array<i32>} : memref<16x128xf32, #tpu.memory_space<vmem>>, vector<16x128xf32>,
    return
  }
  func.func @transform_0(%arg0: i32) -> (i32, i32) {
    %c0_i32 = arith.constant 0 : i32
    %c0_i32_0 = arith.constant 0 : i32
    return %arg0, %c0_i32 : i32, i32
  }
  func.func @transform_1(%arg0: i32) -> (i32, i32) {
    %c0_i32 = arith.constant 0 : i32
    %c0_i32_0 = arith.constant 0 : i32
    return %arg0, %c0_i32 : i32, i32
  }
  func.func @transform_2(%arg0: i32) -> (i32, i32) {
    %c0_i32 = arith.constant 0 : i32
    %c0_i32_0 = arith.constant 0 : i32
    %c0_i32_1 = arith.constant 0 : i32
    return %c0_i32, %c0_i32_0 : i32, i32
  }
  func.func @transform_3(%arg0: i32) -> (i32, i32) {
    %c0_i32 = arith.constant 0 : i32
    %c0_i32_0 = arith.constant 0 : i32
    %c0_i32_1 = arith.constant 0 : i32
    return %c0_i32, %c0_i32_0 : i32, i32
  }
  func.func @transform_4(%arg0: i32) -> (i32, i32) {
    %c0_i32 = arith.constant 0 : i32
    %c0_i32_0 = arith.constant 0 : i32
    return %arg0, %c0_i32 : i32, i32
  }
  func.func @transform_5(%arg0: i32) -> (i32, i32) {
    %c0_i32 = arith.constant 0 : i32
    %c0_i32_0 = arith.constant 0 : i32
    return %arg0, %c0_i32 : i32, i32
  }
}

</mosaic_0001>

<llo_original>
// kernel: tpu_custom_call.1
$region0: #{tpu_custom_call.1}
  #allocation0 [shape = 'u32[]', space=smem, size = 0x4, offset = 0x4, fixed_abs, tag = 'smem constant byte address 0x4 - core index']
  #allocation1 [shape = 'u32[144,128]{1,0:T(1,128)}', space=vmem, size = 0x12000, scoped, tag = 'internal scratch']
  %s0 = inlined_call_operand.hbm [shape: f32[16,128], index: 0, kind: input, shape index: {}]
  %s1 = inlined_call_operand.hbm [shape: f32[16,128], index: 1, kind: input, shape index: {}]
  %s2 = inlined_call_operand.vmem [shape: f32[1,128], index: 2, kind: input, shape index: {}]
  %s3 = inlined_call_operand.vmem [shape: f32[1,128], index: 3, kind: input, shape index: {}]
  %s4 = inlined_call_operand.hbm [shape: f32[16,128], index: 4, kind: output, shape index: {0}]
  %s5 = inlined_call_operand.hbm [shape: f32[16,128], index: 5, kind: output, shape index: {1}]
  %6 = xla_tuple %s4, %s5
  %s7 = sld [smem:[#allocation0]]
  $region42: #{tpu_custom_call.1} parent=0
    _
  %s9 = ssub.s32 1, %s7
  %s10 = scalar_select 0, %s9, %s7
  $region1: #{tpu_custom_call.1} parent=0
    #allocation2 [shape = 'u8[8192]{0}', space=vmem, size = 0x2000, scoped, tag = 'input window, operand 0, single buffered']
    #allocation3 [shape = 's32[1]{0}', space=sflag, size = 0x4, scoped, tag = 'scoped memory for tpu_custom_call.1']
    #allocation4 [shape = 's32[1]{0}', space=sflag, size = 0x4, scoped, tag = 'scoped memory for tpu_custom_call.1']
    #allocation5 [shape = 'u8[8192]{0}', space=vmem, size = 0x2000, scoped, tag = 'input window, operand 1, single buffered']
    #allocation6 [shape = 's32[1]{0}', space=sflag, size = 0x4, scoped, tag = 'scoped memory for tpu_custom_call.1']
    #allocation7 [shape = 'u8[8192]{0}', space=vmem, size = 0x2000, scoped, tag = 'output window, operand 0, single buffered']
    #allocation8 [shape = 'u8[8192]{0}', space=vmem, size = 0x2000, scoped, tag = 'output window, operand 1, single buffered']
    #allocation9 [shape = 's32[1]{0}', space=sflag, size = 0x4, scoped, tag = 'scoped memory for tpu_custom_call.1']
    %11 = vsyncpa [#allocation3], 0
    %12 = vsyncpa [#allocation6], 0
    %13 = vsyncpa [#allocation4], 0
    %14 = vsyncpa [#allocation9], 0
    // Predicated region
    $region2: #{tpu_custom_call.1} parent=1 // pred_check
      _
    $region3: #{tpu_custom_call.1} parent=1 // pred_check_branch
      %16 = sbr.rel (0) target = $region5
    $region4: #{tpu_custom_call.1} parent=1 // pred_region
      %s18 = ssub.s32 256, 256
      %19 = vsyncadd [#allocation3], %s18
      %s20 = sshll.u32 [#allocation2], 4
      %s21 = int_to_ptr.vmem [resolvable:$true] %s20
      %26 = dma.hbm_to_vmem [thread:$0]  %s0, 256, %s21, [#allocation3], 128, 128, 8
    $region5: #{tpu_custom_call.1} parent=1 // pred_fallthru
      _
    // Predicated region
    $region6: #{tpu_custom_call.1} parent=1 // pred_check
      _
    $region7: #{tpu_custom_call.1} parent=1 // pred_check_branch
      %28 = sbr.rel (0) target = $region9
    $region8: #{tpu_custom_call.1} parent=1 // pred_region
      %s30 = ssub.s32 256, 256
      %31 = vsyncadd [#allocation6], %s30
      %s32 = sshll.u32 [#allocation5], 4
      %s33 = int_to_ptr.vmem [resolvable:$true] %s32
      %38 = dma.hbm_to_vmem [thread:$0]  %s1, 256, %s33, [#allocation6], 128, 128, 8
    $region9: #{tpu_custom_call.1} parent=1 // pred_fallthru
      _
    // Predicated region
    $region10: #{tpu_custom_call.1} parent=1 // pred_check
      _
    $region11: #{tpu_custom_call.1} parent=1 // pred_check_branch
      %40 = sbr.rel (0) target = $region13
    $region12: #{tpu_custom_call.1} parent=1 // pred_region
      _
    $region13: #{tpu_custom_call.1} parent=1 // pred_fallthru
      _
    // Predicated region
    $region14: #{tpu_custom_call.1} parent=1 // pred_check
      _
    $region15: #{tpu_custom_call.1} parent=1 // pred_check_branch
      %42 = sbr.rel (0) target = $region17
    $region16: #{tpu_custom_call.1} parent=1 // pred_region
      _
    $region17: #{tpu_custom_call.1} parent=1 // pred_fallthru
      _
    // Predicated region
    $region18: #{tpu_custom_call.1} parent=1 // pred_check
      _
    $region19: #{tpu_custom_call.1} parent=1 // pred_check_branch
      %44 = sbr.rel (0) target = $region21
    $region20: #{tpu_custom_call.1} parent=1 // pred_region
      %45 = dma.done [#allocation3], 256
    $region21: #{tpu_custom_call.1} parent=1 // pred_fallthru
      _
    // Predicated region
    $region22: #{tpu_custom_call.1} parent=1 // pred_check
      _
    $region23: #{tpu_custom_call.1} parent=1 // pred_check_branch
      %47 = sbr.rel (0) target = $region25
    $region24: #{tpu_custom_call.1} parent=1 // pred_region
      %48 = dma.done [#allocation6], 256
    $region25: #{tpu_custom_call.1} parent=1 // pred_fallthru
      _
    %v49 = vld [vmem:[#allocation2] sm:$0xff]
    %v50 = vld [vmem:[#allocation2 + $0x8] sm:$0xff]
    %v51 = vld [vmem:[#allocation5] sm:$0xff]
    %v52 = vld [vmem:[#allocation5 + $0x8] sm:$0xff]
    %v53 = vadd.f32 %v49, %v51
    %v54 = vadd.f32 %v50, %v52
    %v55 = vld [vmem:[%s2] sm:$0x1]
    %v56 = vld [vmem:[%s3] sm:$0x1]
    %57 = vadd.xlane.f32.xlu0 %v53
    %v58 = vpop.xlane.xlu0 %57
    %59 = vadd.xlane.f32.xlu0 %v54
    %v60 = vpop.xlane.xlu0 %59
    %v61 = vrcp.pop 128.0
    %v62 = vmul.f32 %v58, %v61
    %v63 = vmul.f32 %v60, %v61
    %v64 = vsub.f32 %v53, %v62
    %v65 = vsub.f32 %v54, %v63
    %v66 = vmul.f32 %v64, %v64
    %v67 = vmul.f32 %v65, %v65
    %68 = vadd.xlane.f32.xlu0 %v66
    %v69 = vpop.xlane.xlu0 %68
    %70 = vadd.xlane.f32.xlu0 %v67
    %v71 = vpop.xlane.xlu0 %70
    %v72 = vmul.f32 %v69, %v61
    %v73 = vmul.f32 %v71, %v61
    %v74 = vadd.f32 %v72, 1e-05
    %v75 = vadd.f32 %v73, 1e-05
    %v76 = vrsqrt.pop %v74
    %v77 = vrsqrt.pop %v75
    %v78 = vmul.f32 %v64, %v76
    %v79 = vmul.f32 %v65, %v77
    %v81 = vlaneseq
    %v82 = vshrl.u32 %v81, 7
    %v83 = vsub.s32 0, %v82
    %v84 = vrot.slane %v55, %v83
    %v86 = vmul.f32 %v78, %v84
    %v87 = vmul.f32 %v79, %v84
    %v89 = vlaneseq
    %v90 = vshrl.u32 %v89, 7
    %v91 = vsub.s32 0, %v90
    %v92 = vrot.slane %v56, %v91
    %v94 = vadd.f32 %v86, %v92
    %v95 = vadd.f32 %v87, %v92
    %96 = vst [vmem:[#allocation7] sm:$0xff] %v94
    %97 = vst [vmem:[#allocation7 + $0x8] sm:$0xff] %v95
    %98 = vst [vmem:[#allocation8] sm:$0xff] %v53
    %99 = vst [vmem:[#allocation8 + $0x8] sm:$0xff] %v54
    // Predicated region
    $region26: #{tpu_custom_call.1} parent=1 // pred_check
      _
    $region27: #{tpu_custom_call.1} parent=1 // pred_check_branch
      %101 = sbr.rel (0) target = $region29
    $region28: #{tpu_custom_call.1} parent=1 // pred_region
      %s103 = ssub.s32 256, 256
      %104 = vsyncadd [#allocation4], %s103
      %s105 = sshll.u32 [#allocation7], 4
      %s106 = int_to_ptr.vmem [resolvable:$true] %s105
      %111 = dma.vmem_to_hbm [thread:$0]  %s106, 256, %s4, [#allocation4], 128, 128, 8
    $region29: #{tpu_custom_call.1} parent=1 // pred_fallthru
      _
    // Predicated region
    $region30: #{tpu_custom_call.1} parent=1 // pred_check
      _
    $region31: #{tpu_custom_call.1} parent=1 // pred_check_branch
      %113 = sbr.rel (0) target = $region33
    $region32: #{tpu_custom_call.1} parent=1 // pred_region
      %s115 = ssub.s32 256, 256
      %116 = vsyncadd [#allocation9], %s115
      %s117 = sshll.u32 [#allocation8], 4
      %s118 = int_to_ptr.vmem [resolvable:$true] %s117
      %123 = dma.vmem_to_hbm [thread:$0]  %s118, 256, %s5, [#allocation9], 128, 128, 8
    $region33: #{tpu_custom_call.1} parent=1 // pred_fallthru
      _
    // Predicated region
    $region34: #{tpu_custom_call.1} parent=1 // pred_check
      _
    $region35: #{tpu_custom_call.1} parent=1 // pred_check_branch
      %125 = sbr.rel (0) target = $region37
    $region36: #{tpu_custom_call.1} parent=1 // pred_region
      %126 = dma.done [#allocation4], 256
    $region37: #{tpu_custom_call.1} parent=1 // pred_fallthru
      _
    // Predicated region
    $region38: #{tpu_custom_call.1} parent=1 // pred_check
      _
    $region39: #{tpu_custom_call.1} parent=1 // pred_check_branch
      %128 = sbr.rel (0) target = $region41
    $region40: #{tpu_custom_call.1} parent=1 // pred_region
      %129 = dma.done [#allocation9], 256
    $region41: #{tpu_custom_call.1} parent=1 // pred_fallthru
      _
    %130 = vsyncpa [#allocation3], 1
    %131 = vsyncpa [#allocation6], 1
    %132 = vsyncpa [#allocation4], 1
    %133 = vsyncpa [#allocation9], 1

</llo_original>
